<compile_context>
chip_gen: v5e
topology: v5e:2x2
jax: 0.10.0
libtpu: 0.0.40
codegen_flags: <defaults>
</compile_context>

<pallas_src>
import functools

import jax
import jax.numpy as jnp
import numpy as np
from jax import lax
from jax.experimental import pallas as pl
from jax.experimental.pallas import tpu as pltpu

LANE = 128
MXU_DTYPE = jnp.bfloat16            # MXU operand dtype; accumulation is f32.
IM2COL_MAX_C = 64                   # C below this -> single im2col matmul.
VMEM_LIMIT_BYTES = 48 * 1024 * 1024  # > v5e 16 MiB default, < v7x 64 MiB/TC.
TARGET_STRIP_BYTES = 6 * 1024 * 1024  # per-strip working-set target.


# ---------------------------------------------------------------------------
# Tile-row selection helpers
# ---------------------------------------------------------------------------
def _normalize_tile_rows(th, H, W):
    th = int(max(1, min(H, th)))
    # Keep TH*W a multiple of 8 so the lane-dense full-width store property is
    # preserved when there is more than one strip.
    while th > 1 and (th * W) % 8 != 0:
        th -= 1
    if (th * W) % 8 != 0:
        th = H                      # single strip: block equals the full dim
    return th


def _choose_tile_rows(H, W, C, cout_pad, use_im2col):
    wp = W + 2
    in_row = wp * C * 2                       # bf16 strip row (input + scratch)
    out_row = W * cout_pad * 4                # f32 output row
    tap_rows = 18 if use_im2col else 3        # patch / tap temporaries
    per_row = in_row * (3 + tap_rows) + out_row * 3
    th = TARGET_STRIP_BYTES // max(per_row, 1)
    return _normalize_tile_rows(th, H, W)


# ---------------------------------------------------------------------------
# Pallas kernel: fused loc+conf 3x3 conv on one (batch, row-strip) tile.
# ---------------------------------------------------------------------------
def _fused_conv3x3_kernel(x_ref, h_ref, w_ref, b_ref, o_ref, xpad_ref, *,
                          tile_rows, out_w, use_im2col):
    # x_ref:    (1, TH, W+2, C)     bf16 strip interior (W already zero-padded)
    # h_ref:    (1, 1, 2, W+2, C)   bf16 halo rows (top, bottom) for this strip
    # w_ref:    (9, C, Cout_pad)    bf16 tap-major weights (loc ++ conf)
    # b_ref:    (1, Cout_pad)       f32 fused bias (zero in padded lanes)
    # o_ref:    (1, TH*W, Cout_pad) f32 lane-dense output slab
    # xpad_ref: (TH+2, W+2, C)      bf16 VMEM scratch for the halo'd strip
    TH, W = tile_rows, out_w
    C = x_ref.shape[-1]
    cout_pad = o_ref.shape[-1]

    # Assemble the halo'd strip in the VMEM scratch: outer-axis stores only
    # (no sublane/lane concat relayout).  Halo rows already contain zeros at
    # the true image border (built once on the host).
    xpad_ref[0:1] = h_ref[0, 0, 0:1]            # top halo (neighbour strip)
    xpad_ref[1:TH + 1] = x_ref[0]               # strip interior
    xpad_ref[TH + 1:TH + 2] = h_ref[0, 0, 1:2]  # bottom halo (neighbour strip)

    if use_im2col:
        # Small C: one im2col patch matrix and a single MXU push.
        taps = []
        for k in range(9):
            dy, dx = divmod(k, 3)
            taps.append(xpad_ref[dy:dy + TH, dx:dx + W, :].reshape(TH * W, C))
        patches = jnp.concatenate(taps, axis=-1)            # (TH*W, 9*C) bf16
        acc = jnp.dot(patches, w_ref[...].reshape(9 * C, cout_pad),
                      preferred_element_type=jnp.float32)
    else:
        # Large C: 9 accumulating dots, no lane-axis concat, much lower VMEM.
        acc = None
        for k in range(9):
            dy, dx = divmod(k, 3)
            tap = xpad_ref[dy:dy + TH, dx:dx + W, :].reshape(TH * W, C)
            part = jnp.dot(tap, w_ref[k], preferred_element_type=jnp.float32)
            acc = part if acc is None else acc + part

    acc = acc + b_ref[...]                                   # f32 bias add
    o_ref[...] = acc[None].astype(o_ref.dtype)


def fused_head_conv(x_nhwc, w9, b2, *, tile_rows=None):
    """Fused loc+conf 3x3 conv (stride 1, pad 1) for one pyramid level.

    x_nhwc: (N, H, W, C) f32
    w9:     (9, C, Cout_pad) bf16 tap-major weights (lane-padded Cout)
    b2:     (1, Cout_pad) f32
    returns (N, S*TH*W, Cout_pad) f32; caller keeps rows [:H*W].
    """
    N, H, W, C = x_nhwc.shape
    cout_pad = w9.shape[-1]
    use_im2col = C < IM2COL_MAX_C
    if tile_rows is None:
        th = _choose_tile_rows(H, W, C, cout_pad, use_im2col)
    else:
        th = _normalize_tile_rows(tile_rows, H, W)
    S = pl.cdiv(H, th)
    wp = W + 2

    # One fused XLA pass: zero-pad W, row-pad to S*TH (+1 row each side as the
    # vertical-halo source) and cast to bf16 (halves x HBM/DMA bytes; no
    # in-kernel cast over the 9x-expanded patches).
    xp = jnp.pad(x_nhwc, ((0, 0), (1, S * th - H + 1), (1, 1), (0, 0)))
    xp = xp.astype(MXU_DTYPE)
    x_core = xp[:, 1:S * th + 1]                       # (N, S*TH, W+2, C)
    halo_top = xp[:, 0:S * th:th]                      # original rows q*TH - 1
    halo_bot = xp[:, th + 1:S * th + 2:th]             # original rows (q+1)*TH
    x_halo = jnp.stack([halo_top, halo_bot], axis=2)   # (N, S, 2, W+2, C)

    kernel = functools.partial(_fused_conv3x3_kernel, tile_rows=th, out_w=W,
                               use_im2col=use_im2col)
    return pl.pallas_call(
        kernel,
        out_shape=jax.ShapeDtypeStruct((N, S * th * W, cout_pad), jnp.float32),
        grid=(N, S),
        in_specs=[
            pl.BlockSpec((1, th, wp, C), lambda n, q: (n, q, 0, 0)),
            pl.BlockSpec((1, 1, 2, wp, C), lambda n, q: (n, q, 0, 0, 0)),
            pl.BlockSpec((9, C, cout_pad), lambda n, q: (0, 0, 0)),
            pl.BlockSpec((1, cout_pad), lambda n, q: (0, 0)),
        ],
        out_specs=pl.BlockSpec((1, th * W, cout_pad), lambda n, q: (n, q, 0)),
        scratch_shapes=[pltpu.VMEM((th + 2, wp, C), MXU_DTYPE)],
        compiler_params=pltpu.CompilerParams(
            dimension_semantics=("parallel", "parallel"),
            vmem_limit_bytes=VMEM_LIMIT_BYTES),
    )(x_core, x_halo, w9, b2)


# ---------------------------------------------------------------------------
# MultiBoxHead: parameter init (Xavier uniform), param prep, forward.
# ---------------------------------------------------------------------------
def init_multibox_head(key, num_classes, in_channels, num_anchors):
    params = []
    for c, a in zip(in_channels, num_anchors):
        key, kl, kc, kbl, kbc = jax.random.split(key, 5)

        def xavier(k, cin, cout):
            fan_in, fan_out = cin * 9, cout * 9
            bound = float(np.sqrt(6.0 / (fan_in + fan_out)))
            return jax.random.uniform(k, (3, 3, cin, cout), jnp.float32,
                                      -bound, bound)

        def bias_init(k, cin, cout):
            bound = 1.0 / float(np.sqrt(cin * 9))
            return jax.random.uniform(k, (cout,), jnp.float32, -bound, bound)

        w_loc = xavier(kl, c, a * 4)
        b_loc = bias_init(kbl, c, a * 4)
        w_conf = xavier(kc, c, a * num_classes)
        b_conf = bias_init(kbc, c, a * num_classes)
        params.append((w_loc, b_loc, w_conf, b_conf))
    return params


def prepare_fused_params(params):
    """One-time prep: fuse loc+conf along Cout, reshape HWIO -> (9, C, Cout),
    pad Cout to a multiple of 128 (lane-dense) and cast weights to bf16."""
    fused = []
    for (w_loc, b_loc, w_conf, b_conf) in params:
        cin = w_loc.shape[2]
        w = jnp.concatenate([w_loc, w_conf], axis=-1)        # (3,3,C,cout)
        b = jnp.concatenate([b_loc, b_conf], axis=-1)
        cout = w.shape[-1]
        cout_pad = ((cout + LANE - 1) // LANE) * LANE
        w9 = w.reshape(9, cin, cout)
        w9 = jnp.pad(w9, ((0, 0), (0, 0), (0, cout_pad - cout)))
        w9 = w9.astype(MXU_DTYPE)
        b2 = jnp.pad(b, (0, cout_pad - cout)).reshape(1, cout_pad)
        fused.append((w9, b2.astype(jnp.float32)))
    return fused


def multibox_head_forward(xs_nchw, fused_params, num_classes, num_anchors,
                          tile_rows=None):
    """xs_nchw: list of NCHW feature maps (matching the PyTorch API).
    Returns (loc_preds [N,#anchor,4], conf_preds [N,#anchor,num_classes])."""
    if tile_rows is None:
        tile_rows = [None] * len(xs_nchw)
    y_locs, y_confs = [], []
    for x, a, (w9, b2), tr in zip(xs_nchw, num_anchors, fused_params,
                                  tile_rows):
        N, _, H, W = x.shape
        x_nhwc = jnp.transpose(x, (0, 2, 3, 1))        # layout glue (spec NCHW)
        out = fused_head_conv(x_nhwc, w9, b2, tile_rows=tr)
        out = out[:, :H * W, :]                        # drop bottom row padding
        loc = out[:, :, :a * 4]
        conf = out[:, :, a * 4:a * 4 + a * num_classes]
        # Matches PyTorch permute(0,2,3,1).contiguous().view(N, -1, k).
        y_locs.append(loc.reshape(N, -1, 4))
        y_confs.append(conf.reshape(N, -1, num_classes))
    return jnp.concatenate(y_locs, axis=1), jnp.concatenate(y_confs, axis=1)


if __name__ == "__main__":
    num_classes = 6
    in_channels = [4, 128, 8]     # small-C (im2col), large-C (9-dot), small-C
    num_anchors = [2, 3, 3]
    spatials = [8, 8, 4]
    tile_rows = [4, 4, None]      # force 2 row-strips on the 8x8 levels
    N = 2

    key = jax.random.PRNGKey(0)
    key, kp = jax.random.split(key)
    params = init_multibox_head(kp, num_classes, in_channels, num_anchors)
    fused_params = prepare_fused_params(params)

    xs = []
    for c, s in zip(in_channels, spatials):
        key, kx = jax.random.split(key)
        xs.append(jax.random.normal(kx, (N, c, s, s), jnp.float32))  # NCHW

    loc_preds, conf_preds = multibox_head_forward(
        xs, fused_params, num_classes, num_anchors, tile_rows)
    loc_preds = jax.block_until_ready(loc_preds)
    conf_preds = jax.block_until_ready(conf_preds)

    total_anchors = sum(s * s * a for s, a in zip(spatials, num_anchors))
    assert loc_preds.shape == (N, total_anchors, 4), loc_preds.shape
    assert conf_preds.shape == (N, total_anchors, num_classes), conf_preds.shape

    # Numerics vs. a pure-JAX f32 reference (same semantics as the PyTorch
    # head).  Tolerance accounts for bf16 MXU operands (f32 accumulation).
    def conv3x3_ref(x_nhwc, w_hwio, b):
        out = lax.conv_general_dilated(
            x_nhwc, w_hwio, window_strides=(1, 1), padding=((1, 1), (1, 1)),
            dimension_numbers=("NHWC", "HWIO", "NHWC"))
        return out + b.reshape(1, 1, 1, -1)

    ref_locs, ref_confs = [], []
    for x, (w_loc, b_loc, w_conf, b_conf) in zip(xs, params):
        x_nhwc = jnp.transpose(x, (0, 2, 3, 1))
        ref_locs.append(conv3x3_ref(x_nhwc, w_loc, b_loc).reshape(N, -1, 4))
        ref_confs.append(
            conv3x3_ref(x_nhwc, w_conf, b_conf).reshape(N, -1, num_classes))
    np.testing.assert_allclose(np.asarray(loc_preds),
                               np.asarray(jnp.concatenate(ref_locs, 1)),
                               rtol=3e-2, atol=3e-2)
    np.testing.assert_allclose(np.asarray(conf_preds),
                               np.asarray(jnp.concatenate(ref_confs, 1)),
                               rtol=3e-2, atol=3e-2)

    print("KERNEL_OK")
</pallas_src>

<mosaic_0001>
module attributes {stable_mosaic.version = 11 : i64} {
  func.func @_fused_conv3x3_kernel(%arg0: i32, %arg1: i32, %arg2: memref<1x4x10x4xbf16, #tpu.memory_space<vmem>>, %arg3: memref<1x1x2x10x4xbf16, #tpu.memory_space<vmem>>, %arg4: memref<9x4x128xbf16, #tpu.memory_space<vmem>>, %arg5: memref<1x128xf32, #tpu.memory_space<vmem>>, %arg6: memref<1x32x128xf32, #tpu.memory_space<vmem>>, %arg7: memref<6x10x4xbf16, #tpu.memory_space<vmem>>) attributes {dimension_semantics = [#tpu.dimension_semantics<parallel>, #tpu.dimension_semantics<parallel>], iteration_bounds = array<i64: 2, 2>, scalar_prefetch = 0 : i64, scratch_operands = 1 : i64, tpu.core_type = #tpu.core_type<tc>, window_params = [{transform_indices = @transform_0, window_bounds = array<i64: 1, 4, 10, 4>}, {transform_indices = @transform_1, window_bounds = array<i64: 1, 1, 2, 10, 4>}, {pipeline_mode = #tpu.pipeline_mode<synchronous>, transform_indices = @transform_2, window_bounds = array<i64: 9, 4, 128>}, {pipeline_mode = #tpu.pipeline_mode<synchronous>, transform_indices = @transform_3, window_bounds = array<i64: 1, 128>}, {transform_indices = @transform_4, window_bounds = array<i64: 1, 32, 128>}]} {
    %c0 = arith.constant 0 : index
    %c0_0 = arith.constant 0 : index
    %c0_1 = arith.constant 0 : index
    %c0_2 = arith.constant 0 : index
    %c0_3 = arith.constant 0 : index
    %0 = vector.load %arg3[%c0, %c0_0, %c0_1, %c0_2, %c0_3] : memref<1x1x2x10x4xbf16, #tpu.memory_space<vmem>>, vector<1x1x1x10x4xbf16>
    %1 = vector.shape_cast %0 : vector<1x1x1x10x4xbf16> to vector<1x10x4xbf16>
    %c0_4 = arith.constant 0 : index
    %c0_5 = arith.constant 0 : index
    %c0_6 = arith.constant 0 : index
    %2 = vector.load %arg7[%c0_4, %c0_5, %c0_6] : memref<6x10x4xbf16, #tpu.memory_space<vmem>>, vector<1x10x4xbf16>
    tpu.vector_store %arg7[%c0_4, %c0_5, %c0_6], %1 {strides = array<i32>} : memref<6x10x4xbf16, #tpu.memory_space<vmem>>, vector<1x10x4xbf16>,
    %c0_7 = arith.constant 0 : index
    %c0_8 = arith.constant 0 : index
    %c0_9 = arith.constant 0 : index
    %c0_10 = arith.constant 0 : index
    %3 = vector.load %arg2[%c0_7, %c0_8, %c0_9, %c0_10] : memref<1x4x10x4xbf16, #tpu.memory_space<vmem>>, vector<1x4x10x4xbf16>
    %4 = vector.shape_cast %3 : vector<1x4x10x4xbf16> to vector<4x10x4xbf16>
    %c1 = arith.constant 1 : index
    %c0_11 = arith.constant 0 : index
    %c0_12 = arith.constant 0 : index
    %5 = vector.load %arg7[%c1, %c0_11, %c0_12] : memref<6x10x4xbf16, #tpu.memory_space<vmem>>, vector<4x10x4xbf16>
    tpu.vector_store %arg7[%c1, %c0_11, %c0_12], %4 {strides = array<i32>} : memref<6x10x4xbf16, #tpu.memory_space<vmem>>, vector<4x10x4xbf16>,
    %c0_13 = arith.constant 0 : index
    %c0_14 = arith.constant 0 : index
    %c1_15 = arith.constant 1 : index
    %c0_16 = arith.constant 0 : index
    %c0_17 = arith.constant 0 : index
    %6 = vector.load %arg3[%c0_13, %c0_14, %c1_15, %c0_16, %c0_17] : memref<1x1x2x10x4xbf16, #tpu.memory_space<vmem>>, vector<1x1x1x10x4xbf16>
    %7 = vector.shape_cast %6 : vector<1x1x1x10x4xbf16> to vector<1x10x4xbf16>
    %c5 = arith.constant 5 : index
    %c0_18 = arith.constant 0 : index
    %c0_19 = arith.constant 0 : index
    %8 = vector.load %arg7[%c5, %c0_18, %c0_19] : memref<6x10x4xbf16, #tpu.memory_space<vmem>>, vector<1x10x4xbf16>
    tpu.vector_store %arg7[%c5, %c0_18, %c0_19], %7 {strides = array<i32>} : memref<6x10x4xbf16, #tpu.memory_space<vmem>>, vector<1x10x4xbf16>,
    %c0_20 = arith.constant 0 : index
    %c0_21 = arith.constant 0 : index
    %c0_22 = arith.constant 0 : index
    %9 = vector.load %arg7[%c0_20, %c0_21, %c0_22] : memref<6x10x4xbf16, #tpu.memory_space<vmem>>, vector<4x8x4xbf16>
    %10 = vector.shape_cast %9 : vector<4x8x4xbf16> to vector<32x4xbf16>
    %c0_23 = arith.constant 0 : index
    %c1_24 = arith.constant 1 : index
    %c0_25 = arith.constant 0 : index
    %11 = vector.load %arg7[%c0_23, %c1_24, %c0_25] : memref<6x10x4xbf16, #tpu.memory_space<vmem>>, vector<4x8x4xbf16>
    %12 = vector.shape_cast %11 : vector<4x8x4xbf16> to vector<32x4xbf16>
    %c0_26 = arith.constant 0 : index
    %c2 = arith.constant 2 : index
    %c0_27 = arith.constant 0 : index
    %13 = vector.load %arg7[%c0_26, %c2, %c0_27] : memref<6x10x4xbf16, #tpu.memory_space<vmem>>, vector<4x8x4xbf16>
    %14 = vector.shape_cast %13 : vector<4x8x4xbf16> to vector<32x4xbf16>
    %c1_28 = arith.constant 1 : index
    %c0_29 = arith.constant 0 : index
    %c0_30 = arith.constant 0 : index
    %15 = vector.load %arg7[%c1_28, %c0_29, %c0_30] : memref<6x10x4xbf16, #tpu.memory_space<vmem>>, vector<4x8x4xbf16>
    %16 = vector.shape_cast %15 : vector<4x8x4xbf16> to vector<32x4xbf16>
    %c1_31 = arith.constant 1 : index
    %c1_32 = arith.constant 1 : index
    %c0_33 = arith.constant 0 : index
    %17 = vector.load %arg7[%c1_31, %c1_32, %c0_33] : memref<6x10x4xbf16, #tpu.memory_space<vmem>>, vector<4x8x4xbf16>
    %18 = vector.shape_cast %17 : vector<4x8x4xbf16> to vector<32x4xbf16>
    %c1_34 = arith.constant 1 : index
    %c2_35 = arith.constant 2 : index
    %c0_36 = arith.constant 0 : index
    %19 = vector.load %arg7[%c1_34, %c2_35, %c0_36] : memref<6x10x4xbf16, #tpu.memory_space<vmem>>, vector<4x8x4xbf16>
    %20 = vector.shape_cast %19 : vector<4x8x4xbf16> to vector<32x4xbf16>
    %c2_37 = arith.constant 2 : index
    %c0_38 = arith.constant 0 : index
    %c0_39 = arith.constant 0 : index
    %21 = vector.load %arg7[%c2_37, %c0_38, %c0_39] : memref<6x10x4xbf16, #tpu.memory_space<vmem>>, vector<4x8x4xbf16>
    %22 = vector.shape_cast %21 : vector<4x8x4xbf16> to vector<32x4xbf16>
    %c2_40 = arith.constant 2 : index
    %c1_41 = arith.constant 1 : index
    %c0_42 = arith.constant 0 : index
    %23 = vector.load %arg7[%c2_40, %c1_41, %c0_42] : memref<6x10x4xbf16, #tpu.memory_space<vmem>>, vector<4x8x4xbf16>
    %24 = vector.shape_cast %23 : vector<4x8x4xbf16> to vector<32x4xbf16>
    %c2_43 = arith.constant 2 : index
    %c2_44 = arith.constant 2 : index
    %c0_45 = arith.constant 0 : index
    %25 = vector.load %arg7[%c2_43, %c2_44, %c0_45] : memref<6x10x4xbf16, #tpu.memory_space<vmem>>, vector<4x8x4xbf16>
    %26 = vector.shape_cast %25 : vector<4x8x4xbf16> to vector<32x4xbf16>
    %27 = tpu.concatenate %10, %12, %14, %16, %18, %20, %22, %24, %26 in 1 : vector<32x4xbf16>, vector<32x4xbf16>, vector<32x4xbf16>, vector<32x4xbf16>, vector<32x4xbf16>, vector<32x4xbf16>, vector<32x4xbf16>, vector<32x4xbf16>, vector<32x4xbf16> -> vector<32x36xbf16>
    %c0_46 = arith.constant 0 : index
    %c0_47 = arith.constant 0 : index
    %c0_48 = arith.constant 0 : index
    %28 = vector.load %arg4[%c0_46, %c0_47, %c0_48] : memref<9x4x128xbf16, #tpu.memory_space<vmem>>, vector<9x4x128xbf16>
    %29 = vector.shape_cast %28 : vector<9x4x128xbf16> to vector<36x128xbf16>
    %cst = arith.constant dense<0.000000e+00> : vector<32x128xf32>
    %30 = tpu.matmul %27, %29, %cst {dimension_numbers = #tpu.dot_dimension_numbers<[1], [0], [0], [1], [0, 0, 1, 1], [], []>} : vector<32x36xbf16>, vector<36x128xbf16>, vector<32x128xf32> -> vector<32x128xf32>
    %c0_49 = arith.constant 0 : index
    %c0_50 = arith.constant 0 : index
    %31 = vector.load %arg5[%c0_49, %c0_50] : memref<1x128xf32, #tpu.memory_space<vmem>>, vector<1x128xf32>
    %32 = vector.broadcast %31 : vector<1x128xf32> to vector<32x128xf32>
    %33 = arith.addf %30, %32 : vector<32x128xf32>
    %34 = vector.shape_cast %33 : vector<32x128xf32> to vector<1x32x128xf32>
    %c0_51 = arith.constant 0 : index
    %c0_52 = arith.constant 0 : index
    %c0_53 = arith.constant 0 : index
    %35 = vector.load %arg6[%c0_51, %c0_52, %c0_53] : memref<1x32x128xf32, #tpu.memory_space<vmem>>, vector<1x32x128xf32>
    tpu.vector_store %arg6[%c0_51, %c0_52, %c0_53], %34 {strides = array<i32>} : memref<1x32x128xf32, #tpu.memory_space<vmem>>, vector<1x32x128xf32>,
    return
  }
  func.func @transform_0(%arg0: i32, %arg1: i32) -> (i32, i32, i32, i32) {
    %c0_i32 = arith.constant 0 : i32
    %c0_i32_0 = arith.constant 0 : i32
    %c0_i32_1 = arith.constant 0 : i32
    return %arg0, %arg1, %c0_i32, %c0_i32_0 : i32, i32, i32, i32
  }
  func.func @transform_1(%arg0: i32, %arg1: i32) -> (i32, i32, i32, i32, i32) {
    %c0_i32 = arith.constant 0 : i32
    %c0_i32_0 = arith.constant 0 : i32
    %c0_i32_1 = arith.constant 0 : i32
    %c0_i32_2 = arith.constant 0 : i32
    return %arg0, %arg1, %c0_i32, %c0_i32_0, %c0_i32_1 : i32, i32, i32, i32, i32
  }
  func.func @transform_2(%arg0: i32, %arg1: i32) -> (i32, i32, i32) {
    %c0_i32 = arith.constant 0 : i32
    %c0_i32_0 = arith.constant 0 : i32
    %c0_i32_1 = arith.constant 0 : i32
    %c0_i32_2 = arith.constant 0 : i32
    return %c0_i32, %c0_i32_0, %c0_i32_1 : i32, i32, i32
  }
  func.func @transform_3(%arg0: i32, %arg1: i32) -> (i32, i32) {
    %c0_i32 = arith.constant 0 : i32
    %c0_i32_0 = arith.constant 0 : i32
    %c0_i32_1 = arith.constant 0 : i32
    return %c0_i32, %c0_i32_0 : i32, i32
  }
  func.func @transform_4(%arg0: i32, %arg1: i32) -> (i32, i32, i32) {
    %c0_i32 = arith.constant 0 : i32
    %c0_i32_0 = arith.constant 0 : i32
    return %arg0, %arg1, %c0_i32 : i32, i32, i32
  }
}

</mosaic_0001>

<llo_original>
// kernel: tpu_custom_call.1
$region0: #{tpu_custom_call.1}
  #allocation0 [shape = 'u32[]', space=smem, size = 0x4, offset = 0x4, fixed_abs, tag = 'smem constant byte address 0x4 - core index']
  #allocation1 [shape = 'u32[72,128]{1,0:T(1,128)}', space=vmem, size = 0x9000, scoped, tag = 'internal scratch']
  #allocation2 [shape = 'bf16[6,10,4]{2,1,0:T(8,128)(2,1)}', space=vmem, size = 0x6000, scoped, tag = 'scratch operand']
  %s0 = inlined_call_operand.vmem [shape: bf16[2,8,10,4], index: 0, kind: input, shape index: {}]
  %s1 = inlined_call_operand.vmem [shape: bf16[2,2,2,10,4], index: 1, kind: input, shape index: {}]
  %s2 = inlined_call_operand.vmem [shape: bf16[9,4,128], index: 2, kind: input, shape index: {}]
  %s3 = inlined_call_operand.vmem [shape: f32[1,128], index: 3, kind: input, shape index: {}]
  %s4 = inlined_call_operand.hbm [shape: f32[2,64,128], index: 4, kind: output, shape index: {}]
  %s5 = sld [smem:[#allocation0]]
  $region49: #{tpu_custom_call.1} parent=0
    _
  %s7 = ssub.s32 1, %s5
  %s8 = scalar_select 0, %s7, %s5
  $region1: #{tpu_custom_call.1} parent=0
    #allocation3 [shape = 'u8[32768]{0}', space=vmem, size = 0x8000, scoped, tag = 'output window, operand 0']
    #allocation4 [shape = 's32[2]{0}', space=sflag, size = 0x8, scoped, tag = 'scoped memory for tpu_custom_call.1']
    %9 = vsyncpa [#allocation4], 0
    %s10 = scalar_lea.sflag [#allocation4], 1
    %11 = vsyncpa %s10, 0
    loop: start=0, step=1, limit=6
    $region2: #{tpu_custom_call.1} parent=1 // loop_pre_header
      _
    $region3: #{tpu_custom_call.1} parent=1 // loop_header
      %s13 = sphi 0, %s17
      %p14 = scmp.ge.s32.totalorder %s13, 6
      %s20 = sphi 0, %s32
      %s21 = sphi 0, %s28
      %s22 = sphi 0, %s20
      %s23 = sphi 0, %s21
      %s24 = sphi 0, %s22
      %s25 = sphi 0, %s23
      %s37 = sphi 0, %s39
      %s40 = sphi 0, %s37
      %s41 = sphi 0, %s40
      %s57 = sphi 0, %s41
      %s65 = sphi 0, %s67
      %s68 = sphi 0, %s65
      %s69 = sphi 0, %s68
      %s85 = sphi 0, %s69
      %s89 = sphi 0, %s89
      %s91 = sphi 0, %s89
      %s92 = sphi 0, %s91
      %s106 = sphi 0, %s92
      %s110 = sphi 0, %s110
      %s112 = sphi 0, %s110
      %s113 = sphi 0, %s112
      %s127 = sphi 0, %s113
      %s135 = sphi 0, %s137
      %s138 = sphi 0, %s135
      %s139 = sphi 0, %s138
      %s155 = sphi 0, %s139
    $region4: #{tpu_custom_call.1} parent=1 // loop_header_branch
      %16 = sbr.rel (%p14) target = $region8
    $region5: #{tpu_custom_call.1} parent=1 // loop_body
      %s18 = ssub.s32 %s13, 1
      %s19 = ssub.s32 %s13, 2
      %s26 = sadd.s32 1, %s21
      %p27 = scmp.ge.s32.totalorder %s26, 2
      %s28 = scalar_select %p27, 0, %s26
      %s29 = sadd.s32 1, %s20
      %s30 = scalar_select %p27, %s29, %s20
      %p31 = scmp.ge.s32.totalorder %s30, 2
      %s32 = scalar_select %p31, 0, %s30
      %s33 = ssub.s32 %s20, %s32
      %s34 = ssub.s32 %s21, %s28
      %s35 = sor.u32 %s33, %s34
      %p36 = scmp.eq.s32.totalorder %s35, 0
      %s38 = sadd.s32 %s37, 1
      %s39 = scalar_select %p36, %s37, %s38
      %p42 = pneg %p36
      %p43 = scmp.eq.s32.totalorder %s13, 3
      %p44 = por %p42, %p43
      %p45 = scmp.ne.s32.totalorder %s37, %s40
      %p46 = scmp.eq.s32.totalorder %s13, 0
      %p47 = por %p45, %p46
      %p48 = scmp.ne.s32.totalorder %s37, %s40
      %p49 = scmp.eq.s32.totalorder %s18, 3
      %p50 = por %p48, %p49
      %p51 = scmp.ne.s32.totalorder %s40, %s41
      %p52 = scmp.eq.s32.totalorder %s18, 0
      %p53 = por %p51, %p52
      %p54 = scmp.ne.s32.totalorder %s40, %s41
      %p55 = scmp.eq.s32.totalorder %s19, 3
      %p56 = por %p54, %p55
      %p58 = scmp.ne.s32.totalorder %s41, %s57
      %p59 = scmp.eq.s32.totalorder %s19, 0
      %p60 = por %p58, %p59
      %s61 = ssub.s32 %s20, %s32
      %s62 = ssub.s32 %s21, %s28
      %s63 = sor.u32 %s61, %s62
      %p64 = scmp.eq.s32.totalorder %s63, 0
      %s66 = sadd.s32 %s65, 1
      %s67 = scalar_select %p64, %s65, %s66
      %p70 = pneg %p64
      %p71 = scmp.eq.s32.totalorder %s13, 3
      %p72 = por %p70, %p71
      %p73 = scmp.ne.s32.totalorder %s65, %s68
      %p74 = scmp.eq.s32.totalorder %s13, 0
      %p75 = por %p73, %p74
      %p76 = scmp.ne.s32.totalorder %s65, %s68
      %p77 = scmp.eq.s32.totalorder %s18, 3
      %p78 = por %p76, %p77
      %p79 = scmp.ne.s32.totalorder %s68, %s69
      %p80 = scmp.eq.s32.totalorder %s18, 0
      %p81 = por %p79, %p80
      %p82 = scmp.ne.s32.totalorder %s68, %s69
      %p83 = scmp.eq.s32.totalorder %s19, 3
      %p84 = por %p82, %p83
      %p86 = scmp.ne.s32.totalorder %s69, %s85
      %p87 = scmp.eq.s32.totalorder %s19, 0
      %p88 = por %p86, %p87
      %s90 = sadd.s32 %s89, 1
      %p93 = scmp.eq.s32.totalorder %s13, 3
      %p94 = scmp.ne.s32.totalorder %s89, %s91
      %p95 = scmp.eq.s32.totalorder %s13, 0
      %p96 = por %p94, %p95
      %p97 = scmp.ne.s32.totalorder %s89, %s91
      %p98 = scmp.eq.s32.totalorder %s18, 3
      %p99 = por %p97, %p98
      %p100 = scmp.ne.s32.totalorder %s91, %s92
      %p101 = scmp.eq.s32.totalorder %s18, 0
      %p102 = por %p100, %p101
      %p103 = scmp.ne.s32.totalorder %s91, %s92
      %p104 = scmp.eq.s32.totalorder %s19, 3
      %p105 = por %p103, %p104
      %p107 = scmp.ne.s32.totalorder %s92, %s106
      %p108 = scmp.eq.s32.totalorder %s19, 0
      %p109 = por %p107, %p108
      %s111 = sadd.s32 %s110, 1
      %p114 = scmp.eq.s32.totalorder %s13, 3
      %p115 = scmp.ne.s32.totalorder %s110, %s112
      %p116 = scmp.eq.s32.totalorder %s13, 0
      %p117 = por %p115, %p116
      %p118 = scmp.ne.s32.totalorder %s110, %s112
      %p119 = scmp.eq.s32.totalorder %s18, 3
      %p120 = por %p118, %p119
      %p121 = scmp.ne.s32.totalorder %s112, %s113
      %p122 = scmp.eq.s32.totalorder %s18, 0
      %p123 = por %p121, %p122
      %p124 = scmp.ne.s32.totalorder %s112, %s113
      %p125 = scmp.eq.s32.totalorder %s19, 3
      %p126 = por %p124, %p125
      %p128 = scmp.ne.s32.totalorder %s113, %s127
      %p129 = scmp.eq.s32.totalorder %s19, 0
      %p130 = por %p128, %p129
      %s131 = ssub.s32 %s20, %s32
      %s132 = ssub.s32 %s21, %s28
      %s133 = sor.u32 %s131, %s132
      %p134 = scmp.eq.s32.totalorder %s133, 0
      %s136 = sadd.s32 %s135, 1
      %s137 = scalar_select %p134, %s135, %s136
      %p140 = pneg %p134
      %p141 = scmp.eq.s32.totalorder %s13, 3
      %p142 = por %p140, %p141
      %p143 = scmp.ne.s32.totalorder %s135, %s138
      %p144 = scmp.eq.s32.totalorder %s13, 0
      %p145 = por %p143, %p144
      %p146 = scmp.ne.s32.totalorder %s135, %s138
      %p147 = scmp.eq.s32.totalorder %s18, 3
      %p148 = por %p146, %p147
      %p149 = scmp.ne.s32.totalorder %s138, %s139
      %p150 = scmp.eq.s32.totalorder %s18, 0
      %p151 = por %p149, %p150
      %p152 = scmp.ne.s32.totalorder %s138, %s139
      %p153 = scmp.eq.s32.totalorder %s19, 3
      %p154 = por %p152, %p153
      %p156 = scmp.ne.s32.totalorder %s139, %s155
      %p157 = scmp.eq.s32.totalorder %s19, 0
      %p158 = por %p156, %p157
      %p159 = scmp.le.s32.totalorder 1, %s13
      %p160 = scmp.lt.s32.totalorder %s13, 5
      %p161 = pnand %p159, %p160
      %p162 = pneg %p161
      // Predicated region
      $region9: #{tpu_custom_call.1} parent=5 // pred_check
        _
      $region10: #{tpu_custom_call.1} parent=5 // pred_check_branch
        %164 = sbr.rel (%p161) target = $region12
      $region11: #{tpu_custom_call.1} parent=5 // pred_region
        %s165 = ssub.s32 %s13, 1
        // Predicated region
        $region13: #{tpu_custom_call.1} parent=11 // pred_check
          %p166 = pneg %p102
        $region14: #{tpu_custom_call.1} parent=11 // pred_check_branch
          %168 = sbr.rel (%p166) target = $region16
        $region15: #{tpu_custom_call.1} parent=11 // pred_region
          _
        $region16: #{tpu_custom_call.1} parent=11 // pred_fallthru
          _
        // Predicated region
        $region17: #{tpu_custom_call.1} parent=11 // pred_check
          %p169 = pneg %p123
        $region18: #{tpu_custom_call.1} parent=11 // pred_check_branch
          %171 = sbr.rel (%p169) target = $region20
        $region19: #{tpu_custom_call.1} parent=11 // pred_region
          _
        $region20: #{tpu_custom_call.1} parent=11 // pred_fallthru
          _
      $region12: #{tpu_custom_call.1} parent=5 // pred_fallthru
        _
      %p172 = scmp.lt.s32.totalorder %s13, 4
      // Predicated region
      $region21: #{tpu_custom_call.1} parent=5 // pred_check
        %p173 = pneg %p172
      $region22: #{tpu_custom_call.1} parent=5 // pred_check_branch
        %175 = sbr.rel (%p173) target = $region24
      $region23: #{tpu_custom_call.1} parent=5 // pred_region
        // Predicated region
        $region25: #{tpu_custom_call.1} parent=23 // pred_check
          %p176 = pneg %p47
        $region26: #{tpu_custom_call.1} parent=23 // pred_check_branch
          %178 = sbr.rel (%p176) target = $region28
        $region27: #{tpu_custom_call.1} parent=23 // pred_region
          %s179 = smul.u32 4, %s21
          %p180 = scmp.lt.s32.totalorder %s20, 1
          %s181 = scalar_select %p180, %s20, 1
          %p182 = scmp.lt.s32.totalorder %s179, 7
          %s183 = scalar_select %p182, %s179, 7
          %s184 = smul.addr %s183, 2
          %s185 = smul.addr %s181, 16
          %s186 = sadd.s32 %s184, %s185
          %s187 = smul.addr %s186, 4
          %s188 = scalar_lea.vmem %s0, %s187
          %s189 = smul.u32 4, %s21
        $region28: #{tpu_custom_call.1} parent=23 // pred_fallthru
          _
        // Predicated region
        $region29: #{tpu_custom_call.1} parent=23 // pred_check
          %p190 = pneg %p75
        $region30: #{tpu_custom_call.1} parent=23 // pred_check_branch
          %192 = sbr.rel (%p190) target = $region32
        $region31: #{tpu_custom_call.1} parent=23 // pred_region
          %p193 = scmp.lt.s32.totalorder %s20, 1
          %s194 = scalar_select %p193, %s20, 1
          %p195 = scmp.lt.s32.totalorder %s21, 1
          %s196 = scalar_select %p195, %s21, 1
          %s197 = smul.addr %s196, 4
          %s198 = smul.addr %s194, 8
          %s199 = sadd.s32 %s197, %s198
          %s200 = smul.addr %s199, 4
          %s201 = scalar_lea.vmem %s1, %s200
        $region32: #{tpu_custom_call.1} parent=23 // pred_fallthru
          _
      $region24: #{tpu_custom_call.1} parent=5 // pred_fallthru
        _
      %p202 = scmp.le.s32.totalorder 1, %s13
      %p203 = scmp.lt.s32.totalorder %s13, 5
      %p204 = pnand %p202, %p203
      %p205 = pneg %p204
      // Predicated region
      $region33: #{tpu_custom_call.1} parent=5 // pred_check
        _
      $region34: #{tpu_custom_call.1} parent=5 // pred_check_branch
        %207 = sbr.rel (%p204) target = $region36
      $region35: #{tpu_custom_call.1} parent=5 // pred_region
        %s208 = ssub.s32 %s13, 1
        %s209 = smul.u32 4, %s23
        %p210 = scmp.lt.s32.totalorder %s22, 1
        %s211 = scalar_select %p210, %s22, 1
        %p212 = scmp.lt.s32.totalorder %s209, 7
        %s213 = scalar_select %p212, %s209, 7
        %s214 = smul.addr %s213, 2
        %s215 = smul.addr %s211, 16
        %s216 = sadd.s32 %s214, %s215
        %s217 = smul.addr %s216, 4
        %s218 = scalar_lea.vmem %s0, %s217
        %p219 = pneg %p53
        %p220 = pneg %p50
        %p221 = scmp.lt.s32.totalorder %s22, 1
        %s222 = scalar_select %p221, %s22, 1
        %p223 = scmp.lt.s32.totalorder %s23, 1
        %s224 = scalar_select %p223, %s23, 1
        %s225 = smul.addr %s224, 4
        %s226 = smul.addr %s222, 8
        %s227 = sadd.s32 %s225, %s226
        %s228 = smul.addr %s227, 4
        %s229 = scalar_lea.vmem %s1, %s228
        %p230 = pneg %p81
        %p231 = pneg %p78
        %p232 = pneg %p102
        %p233 = pneg %p99
        %p234 = pneg %p123
        %p235 = pneg %p120
        %p236 = pneg %p151
        %p237 = pneg %p148
        %s238 = sand.u32 %s138, 1
        %s239 = scalar_lea.sflag [#allocation4], %s238
        %s240 = sand.u32 %s138, 1
        %s241 = smul.addr %s240, 32
        %s242 = scalar_lea.vmem [#allocation3], %s241
        %s243 = smul.u32 4, %s23
        %p244 = scmp.lt.s32.totalorder %s22, 1
        %s245 = scalar_select %p244, %s22, 1
        %p246 = scmp.lt.s32.totalorder %s243, 7
        %s247 = scalar_select %p246, %s243, 7
        %s248 = smul.addr %s247, 2
        %s249 = smul.addr %s245, 16
        %s250 = sadd.s32 %s248, %s249
        %s251 = smul.addr %s250, 4
        %s252 = scalar_lea.vmem %s0, %s251
        %s253 = smul.u32 4, %s23
        %p254 = scmp.lt.s32.totalorder %s22, 1
        %s255 = scalar_select %p254, %s22, 1
        %p256 = scmp.lt.s32.totalorder %s23, 1
        %s257 = scalar_select %p256, %s23, 1
        %s258 = smul.addr %s257, 4
        %s259 = smul.addr %s255, 8
        %s260 = sadd.s32 %s258, %s259
        %s261 = smul.addr %s260, 4
        %s262 = scalar_lea.vmem %s1, %s261
        %s263 = smul.u32 4, %s23
        %v265 = vld [vmem:[%s262] sm:$0xf]
        %v266 = vld [vmem:[%s262 + $0x4] sm:$0x1]
        %vm267 = vcmask 27648
        %268 = vst.msk [vmem:[#allocation2] sm:$0xf] %vm267, %v265
        %vm269 = vcmask 24576
        %270 = vst.msk [vmem:[#allocation2 + $0x4] sm:$0x1] %vm269, %v266
        %v271 = vld [vmem:[%s252] sm:$0xf]
        %v272 = vld [vmem:[%s252 + $0x4] sm:$0x1]
        %v273 = vld [vmem:[%s252 + $0x8] sm:$0xf]
        %v274 = vld [vmem:[%s252 + $0xc] sm:$0x1]
        %v275 = vld [vmem:[%s252 + $0x10] sm:$0xf]
        %v276 = vld [vmem:[%s252 + $0x14] sm:$0x1]
        %v277 = vld [vmem:[%s252 + $0x18] sm:$0xf]
        %v278 = vld [vmem:[%s252 + $0x1c] sm:$0x1]
        %s279 = scalar_lea.vmem [#allocation2], 8
        %280 = vst.msk [vmem:[%s279] sm:$0xf] %vm267, %v271
        %281 = vst.msk [vmem:[%s279 + $0x4] sm:$0x1] %vm269, %v272
        %282 = vst.msk [vmem:[%s279 + $0x8] sm:$0xf] %vm267, %v273
        %283 = vst.msk [vmem:[%s279 + $0xc] sm:$0x1] %vm269, %v274
        %284 = vst.msk [vmem:[%s279 + $0x10] sm:$0xf] %vm267, %v275
        %285 = vst.msk [vmem:[%s279 + $0x14] sm:$0x1] %vm269, %v276
        %286 = vst.msk [vmem:[%s279 + $0x18] sm:$0xf] %vm267, %v277
        %287 = vst.msk [vmem:[%s279 + $0x1c] sm:$0x1] %vm269, %v278
        %s288 = scalar_lea.vmem %s262, 8
        %v289 = vld [vmem:[%s288] sm:$0xf]
        %v290 = vld [vmem:[%s288 + $0x4] sm:$0x1]
        %s291 = scalar_lea.vmem [#allocation2], 40
        %292 = vst.msk [vmem:[%s291] sm:$0xf] %vm267, %v289
        %293 = vst.msk [vmem:[%s291 + $0x4] sm:$0x1] %vm269, %v290
        %v294 = vld [vmem:[#allocation2] sm:$0xf]
        %v295 = vld [vmem:[#allocation2 + $0x8] sm:$0xf]
        %v296 = vld [vmem:[#allocation2 + $0x10] sm:$0xf]
        %v297 = vld [vmem:[#allocation2 + $0x18] sm:$0xf]
        %v298 = vld [vmem:[#allocation2 + $0x4] sm:$0x1]
        %v299 = vld [vmem:[#allocation2 + $0xc] sm:$0x1]
        %v300 = vld [vmem:[#allocation2 + $0x14] sm:$0x1]
        %v301 = vld [vmem:[#allocation2 + $0x1c] sm:$0x1]
        %vm302 = vsmask.f32 3328
        %vm303 = vsmask.f32 7440
        %vm304 = vmor %vm302, %vm303
        %v306 = vshrl.u32 %v294, 16
        %v308 = vrot.slane %v306, 4
        %v309 = vshll.u32 %v294, 16
        %v311 = vrot.slane %v309, 5
        %v312 = vor.u32 %v308, %v311
        %v313 = vrot.slane %v312, 4
        %v315 = vshll.u32 %v298, 16
        %v317 = vrot.slane %v315, 5
        %v318 = vsel %vm304, %v313, %v317
        %v320 = vshrl.u32 %v295, 16
        %v322 = vrot.slane %v320, 4
        %v323 = vshll.u32 %v295, 16
        %v325 = vrot.slane %v323, 5
        %v326 = vor.u32 %v322, %v325
        %v327 = vrot.slane %v326, 4
        %v329 = vshll.u32 %v299, 16
        %v331 = vrot.slane %v329, 5
        %v332 = vsel %vm304, %v327, %v331
        %v334 = vshrl.u32 %v296, 16
        %v336 = vrot.slane %v334, 4
        %v337 = vshll.u32 %v296, 16
        %v339 = vrot.slane %v337, 5
        %v340 = vor.u32 %v336, %v339
        %v341 = vrot.slane %v340, 4
        %v343 = vshll.u32 %v300, 16
        %v345 = vrot.slane %v343, 5
        %v346 = vsel %vm304, %v341, %v345
        %v348 = vshrl.u32 %v297, 16
        %v350 = vrot.slane %v348, 4
        %v351 = vshll.u32 %v297, 16
        %v353 = vrot.slane %v351, 5
        %v354 = vor.u32 %v350, %v353
        %v355 = vrot.slane %v354, 4
        %v357 = vshll.u32 %v301, 16
        %v359 = vrot.slane %v357, 5
        %v360 = vsel %vm304, %v355, %v359
        %v361 = vld [vmem:[#allocation2] sm:$0xe]
        %v362 = vld [vmem:[#allocation2 + $0x8] sm:$0xe]
        %v363 = vld [vmem:[#allocation2 + $0x10] sm:$0xe]
        %v364 = vld [vmem:[#allocation2 + $0x18] sm:$0xe]
        %vm373 = vcmask 1042432
        %vm374 = vcmask 1046532
        %vm375 = vmor %vm373, %vm374
        %v376 = vrot.slane %v361, 5
        %v377 = vrot.slane %v376, 4
        %v378 = vrot.slane %v298, 5
        %v379 = vsel %vm375, %v377, %v378
        %v380 = vrot.slane %v362, 5
        %v381 = vrot.slane %v380, 4
        %v382 = vrot.slane %v299, 5
        %v383 = vsel %vm375, %v381, %v382
        %v384 = vrot.slane %v363, 5
        %v385 = vrot.slane %v384, 4
        %v386 = vrot.slane %v300, 5
        %v387 = vsel %vm375, %v385, %v386
        %v388 = vrot.slane %v364, 5
        %v389 = vrot.slane %v388, 4
        %v390 = vrot.slane %v301, 5
        %v391 = vsel %vm375, %v389, %v390
        %v392 = vld [vmem:[%s279] sm:$0xf]
        %v393 = vld [vmem:[%s279 + $0x8] sm:$0xf]
        %v394 = vld [vmem:[%s279 + $0x10] sm:$0xf]
        %v395 = vld [vmem:[%s279 + $0x18] sm:$0xf]
        %v396 = vld [vmem:[%s279 + $0x4] sm:$0x1]
        %v397 = vld [vmem:[%s279 + $0xc] sm:$0x1]
        %v398 = vld [vmem:[%s279 + $0x14] sm:$0x1]
        %v399 = vld [vmem:[%s279 + $0x1c] sm:$0x1]
        %v401 = vshrl.u32 %v392, 16
        %v403 = vrot.slane %v401, 4
        %v404 = vshll.u32 %v392, 16
        %v406 = vrot.slane %v404, 5
        %v407 = vor.u32 %v403, %v406
        %v408 = vrot.slane %v407, 4
        %v410 = vshll.u32 %v396, 16
        %v412 = vrot.slane %v410, 5
        %v413 = vsel %vm304, %v408, %v412
        %v415 = vshrl.u32 %v393, 16
        %v417 = vrot.slane %v415, 4
        %v418 = vshll.u32 %v393, 16
        %v420 = vrot.slane %v418, 5
        %v421 = vor.u32 %v417, %v420
        %v422 = vrot.slane %v421, 4
        %v424 = vshll.u32 %v397, 16
        %v426 = vrot.slane %v424, 5
        %v427 = vsel %vm304, %v422, %v426
        %v429 = vshrl.u32 %v394, 16
        %v431 = vrot.slane %v429, 4
        %v432 = vshll.u32 %v394, 16
        %v434 = vrot.slane %v432, 5
        %v435 = vor.u32 %v431, %v434
        %v436 = vrot.slane %v435, 4
        %v438 = vshll.u32 %v398, 16
        %v440 = vrot.slane %v438, 5
        %v441 = vsel %vm304, %v436, %v440
        %v443 = vshrl.u32 %v395, 16
        %v445 = vrot.slane %v443, 4
        %v446 = vshll.u32 %v395, 16
        %v448 = vrot.slane %v446, 5
        %v449 = vor.u32 %v445, %v448
        %v450 = vrot.slane %v449, 4
        %v452 = vshll.u32 %v399, 16
        %v454 = vrot.slane %v452, 5
        %v455 = vsel %vm304, %v450, %v454
        %v456 = vld [vmem:[%s279] sm:$0xe]
        %v457 = vld [vmem:[%s279 + $0x8] sm:$0xe]
        %v458 = vld [vmem:[%s279 + $0x10] sm:$0xe]
        %v459 = vld [vmem:[%s279 + $0x18] sm:$0xe]
        %v468 = vrot.slane %v456, 5
        %v469 = vrot.slane %v468, 4
        %v470 = vrot.slane %v396, 5
        %v471 = vsel %vm375, %v469, %v470
        %v472 = vrot.slane %v457, 5
        %v473 = vrot.slane %v472, 4
        %v474 = vrot.slane %v397, 5
        %v475 = vsel %vm375, %v473, %v474
        %v476 = vrot.slane %v458, 5
        %v477 = vrot.slane %v476, 4
        %v478 = vrot.slane %v398, 5
        %v479 = vsel %vm375, %v477, %v478
        %v480 = vrot.slane %v459, 5
        %v481 = vrot.slane %v480, 4
        %v482 = vrot.slane %v399, 5
        %v483 = vsel %vm375, %v481, %v482
        %s484 = scalar_lea.vmem [#allocation2], 16
        %v485 = vld [vmem:[%s484] sm:$0xf]
        %v486 = vld [vmem:[%s484 + $0x8] sm:$0xf]
        %v487 = vld [vmem:[%s484 + $0x10] sm:$0xf]
        %v488 = vld [vmem:[%s484 + $0x18] sm:$0xf]
        %v489 = vld [vmem:[%s484 + $0x4] sm:$0x1]
        %v490 = vld [vmem:[%s484 + $0xc] sm:$0x1]
        %v491 = vld [vmem:[%s484 + $0x14] sm:$0x1]
        %v492 = vld [vmem:[%s484 + $0x1c] sm:$0x1]
        %v494 = vshrl.u32 %v485, 16
        %v496 = vrot.slane %v494, 4
        %v497 = vshll.u32 %v485, 16
        %v499 = vrot.slane %v497, 5
        %v500 = vor.u32 %v496, %v499
        %v501 = vrot.slane %v500, 4
        %v503 = vshll.u32 %v489, 16
        %v505 = vrot.slane %v503, 5
        %v506 = vsel %vm304, %v501, %v505
        %v508 = vshrl.u32 %v486, 16
        %v510 = vrot.slane %v508, 4
        %v511 = vshll.u32 %v486, 16
        %v513 = vrot.slane %v511, 5
        %v514 = vor.u32 %v510, %v513
        %v515 = vrot.slane %v514, 4
        %v517 = vshll.u32 %v490, 16
        %v519 = vrot.slane %v517, 5
        %v520 = vsel %vm304, %v515, %v519
        %v522 = vshrl.u32 %v487, 16
        %v524 = vrot.slane %v522, 4
        %v525 = vshll.u32 %v487, 16
        %v527 = vrot.slane %v525, 5
        %v528 = vor.u32 %v524, %v527
        %v529 = vrot.slane %v528, 4
        %v531 = vshll.u32 %v491, 16
        %v533 = vrot.slane %v531, 5
        %v534 = vsel %vm304, %v529, %v533
        %v536 = vshrl.u32 %v488, 16
        %v538 = vrot.slane %v536, 4
        %v539 = vshll.u32 %v488, 16
        %v541 = vrot.slane %v539, 5
        %v542 = vor.u32 %v538, %v541
        %v543 = vrot.slane %v542, 4
        %v545 = vshll.u32 %v492, 16
        %v547 = vrot.slane %v545, 5
        %v548 = vsel %vm304, %v543, %v547
        %v549 = vld [vmem:[%s484] sm:$0xe]
        %v550 = vld [vmem:[%s484 + $0x8] sm:$0xe]
        %v551 = vld [vmem:[%s484 + $0x10] sm:$0xe]
        %v552 = vld [vmem:[%s484 + $0x18] sm:$0xe]
        %v561 = vrot.slane %v549, 5
        %v562 = vrot.slane %v561, 4
        %v563 = vrot.slane %v489, 5
        %v564 = vsel %vm375, %v562, %v563
        %v565 = vrot.slane %v550, 5
        %v566 = vrot.slane %v565, 4
        %v567 = vrot.slane %v490, 5
        %v568 = vsel %vm375, %v566, %v567
        %v569 = vrot.slane %v551, 5
        %v570 = vrot.slane %v569, 4
        %v571 = vrot.slane %v491, 5
        %v572 = vsel %vm375, %v570, %v571
        %v573 = vrot.slane %v552, 5
        %v574 = vrot.slane %v573, 4
        %v575 = vrot.slane %v492, 5
        %v576 = vsel %vm375, %v574, %v575
        %v581 = vunpack.c.l.b16 %v294
        %v582 = vunpack.c.l.b16 %v295
        %v583 = vunpack.c.l.b16 %v296
        %v584 = vunpack.c.l.b16 %v297
        %v585 = vpack.c.b16 %v582, %v581
        %v586 = vpack.c.b16 %v584, %v583
        %v587 = vunpack.c.l.b16 %v318
        %v588 = vunpack.c.l.b16 %v332
        %v589 = vunpack.c.l.b16 %v346
        %v590 = vunpack.c.l.b16 %v360
        %v591 = vpack.c.b16 %v588, %v587
        %v592 = vpack.c.b16 %v590, %v589
        %593 = vrot.lane.b32.xlu0 %v591, 4
        %v594 = vpop.permute.xlu0 %593
        %595 = vrot.lane.b32.xlu0 %v592, 4
        %v596 = vpop.permute.xlu0 %595
        %v597 = vunpack.c.l.b16 %v379
        %v598 = vunpack.c.l.b16 %v383
        %v599 = vunpack.c.l.b16 %v387
        %v600 = vunpack.c.l.b16 %v391
        %v601 = vpack.c.b16 %v598, %v597
        %v602 = vpack.c.b16 %v600, %v599
        %603 = vrot.lane.b32.xlu0 %v601, 8
        %v604 = vpop.permute.xlu0 %603
        %605 = vrot.lane.b32.xlu0 %v602, 8
        %v606 = vpop.permute.xlu0 %605
        %v611 = vunpack.c.l.b16 %v392
        %v612 = vunpack.c.l.b16 %v393
        %v613 = vunpack.c.l.b16 %v394
        %v614 = vunpack.c.l.b16 %v395
        %v615 = vpack.c.b16 %v612, %v611
        %v616 = vpack.c.b16 %v614, %v613
        %617 = vrot.lane.b32.xlu0 %v615, 12
        %v618 = vpop.permute.xlu0 %617
        %619 = vrot.lane.b32.xlu0 %v616, 12
        %v620 = vpop.permute.xlu0 %619
        %v621 = vunpack.c.l.b16 %v413
        %v622 = vunpack.c.l.b16 %v427
        %v623 = vunpack.c.l.b16 %v441
        %v624 = vunpack.c.l.b16 %v455
        %v625 = vpack.c.b16 %v622, %v621
        %v626 = vpack.c.b16 %v624, %v623
        %627 = vrot.lane.b32.xlu0 %v625, 16
        %v628 = vpop.permute.xlu0 %627
        %629 = vrot.lane.b32.xlu0 %v626, 16
        %v630 = vpop.permute.xlu0 %629
        %v631 = vunpack.c.l.b16 %v471
        %v632 = vunpack.c.l.b16 %v475
        %v633 = vunpack.c.l.b16 %v479
        %v634 = vunpack.c.l.b16 %v483
        %v635 = vpack.c.b16 %v632, %v631
        %v636 = vpack.c.b16 %v634, %v633
        %637 = vrot.lane.b32.xlu0 %v635, 20
        %v638 = vpop.permute.xlu0 %637
        %639 = vrot.lane.b32.xlu0 %v636, 20
        %v640 = vpop.permute.xlu0 %639
        %v645 = vunpack.c.l.b16 %v485
        %v646 = vunpack.c.l.b16 %v486
        %v647 = vunpack.c.l.b16 %v487
        %v648 = vunpack.c.l.b16 %v488
        %v649 = vpack.c.b16 %v646, %v645
        %v650 = vpack.c.b16 %v648, %v647
        %651 = vrot.lane.b32.xlu0 %v649, 24
        %v652 = vpop.permute.xlu0 %651
        %653 = vrot.lane.b32.xlu0 %v650, 24
        %v654 = vpop.permute.xlu0 %653
        %v655 = vunpack.c.l.b16 %v506
        %v656 = vunpack.c.l.b16 %v520
        %v657 = vunpack.c.l.b16 %v534
        %v658 = vunpack.c.l.b16 %v548
        %v659 = vpack.c.b16 %v656, %v655
        %v660 = vpack.c.b16 %v658, %v657
        %661 = vrot.lane.b32.xlu0 %v659, 28
        %v662 = vpop.permute.xlu0 %661
        %663 = vrot.lane.b32.xlu0 %v660, 28
        %v664 = vpop.permute.xlu0 %663
        %v665 = vunpack.c.l.b16 %v564
        %v666 = vunpack.c.l.b16 %v568
        %v667 = vunpack.c.l.b16 %v572
        %v668 = vunpack.c.l.b16 %v576
        %v669 = vpack.c.b16 %v666, %v665
        %v670 = vpack.c.b16 %v668, %v667
        %671 = vrot.lane.b32.xlu0 %v669, 32
        %v672 = vpop.permute.xlu0 %671
        %673 = vrot.lane.b32.xlu0 %v670, 32
        %v674 = vpop.permute.xlu0 %673
        %vm675 = vcmask 31744
        %v678 = vsel %vm675, %v585, %v594
        %v681 = vsel %vm675, %v586, %v596
        %vm682 = vcmask 64512
        %v684 = vsel %vm682, %v678, %v604
        %v686 = vsel %vm682, %v681, %v606
        %vm687 = vcmask 97280
        %v689 = vsel %vm687, %v684, %v618
        %v691 = vsel %vm687, %v686, %v620
        %vm692 = vcmask 130048
        %v694 = vsel %vm692, %v689, %v628
        %v696 = vsel %vm692, %v691, %v630
        %vm697 = vcmask 162816
        %v699 = vsel %vm697, %v694, %v638
        %v701 = vsel %vm697, %v696, %v640
        %vm702 = vcmask 195584
        %v704 = vsel %vm702, %v699, %v652
        %v706 = vsel %vm702, %v701, %v654
        %vm707 = vcmask 228352
        %v709 = vsel %vm707, %v704, %v662
        %v711 = vsel %vm707, %v706, %v664
        %vm712 = vcmask 261120
        %v714 = vsel %vm712, %v709, %v672
        %v716 = vsel %vm712, %v711, %v674
        %v717 = vld [vmem:[%s2] sm:$0x3]
        %v718 = vld [vmem:[%s2 + $0x2] sm:$0x3]
        %v719 = vld [vmem:[%s2 + $0x4] sm:$0x3]
        %v720 = vld [vmem:[%s2 + $0x6] sm:$0x3]
        %v721 = vld [vmem:[%s2 + $0x8] sm:$0x3]
        %v722 = vld [vmem:[%s2 + $0xa] sm:$0x3]
        %v723 = vld [vmem:[%s2 + $0xc] sm:$0x3]
        %v724 = vld [vmem:[%s2 + $0xe] sm:$0x3]
        %v725 = vld [vmem:[%s2 + $0x10] sm:$0x3]
        %v726 = vld [vmem:[%s3] sm:$0x1]
        %v728 = vperm.slane %v726, 0
        %731 = vst [vmem:[#allocation1] ss:$4 sm:$0xff] %v717
        %s733 = scalar_lea.vmem [#allocation1], 1
        %734 = vst [vmem:[%s733] ss:$4 sm:$0xff] %v718
        %s736 = scalar_lea.vmem [#allocation1], 2
        %737 = vst [vmem:[%s736] ss:$4 sm:$0xff] %v719
        %s739 = scalar_lea.vmem [#allocation1], 3
        %740 = vst [vmem:[%s739] ss:$4 sm:$0xff] %v720
        %s742 = scalar_lea.vmem [#allocation1], 32
        %743 = vst [vmem:[%s742] ss:$4 sm:$0xff] %v721
        %s745 = scalar_lea.vmem [#allocation1], 33
        %746 = vst [vmem:[%s745] ss:$4 sm:$0xff] %v722
        %s748 = scalar_lea.vmem [#allocation1], 34
        %749 = vst [vmem:[%s748] ss:$4 sm:$0xff] %v723
        %s751 = scalar_lea.vmem [#allocation1], 35
        %752 = vst [vmem:[%s751] ss:$4 sm:$0xff] %v724
        %v753 = vld.sshfl [vmem:[#allocation1] sm:$0xff pattern:$0x73625140]
        %v754 = vld.sshfl [vmem:[#allocation1 + $0x20] sm:$0xff pattern:$0x73625140]
        %756 = vst [vmem:[#allocation1] ss:$4 sm:$0xff] %v725
        %v757 = vld.sshfl [vmem:[#allocation1] sm:$0xff pattern:$0x73625140]
        %vm760 = vcmask 293888
        %v761 = vsel %vm760, %v714, 0
        %v763 = vsel %vm760, %v716, 0
        %vm765 = vcmask 1041408
        %v766 = vsel %vm765, %v757, 0
        %768 = vmatpush.bf16.msra.mxu0 0
        %769 = vmatpush.bf16.msra.mxu0 0
        %770 = vmatpush.bf16.msra.mxu0 0
        %771 = vmatpush.bf16.msra.mxu0 0
        %772 = vmatpush.bf16.msra.mxu0 0
        %773 = vmatpush.bf16.msra.mxu0 %v766
        %774 = vmatpush.bf16.msra.mxu0 %v754
        %775 = vmatpush.bf16.msra.mxu0 %v753
        %776 = vmatmul.bf16.gmra.mxu0 %v761
        %v777 = vpop.f32.mrf.mxu0
        %v778 = vadd.f32 %v728, %v777
        %v779 = vpop.f32.mrf.mxu0
        %v780 = vadd.f32 %v728, %v779
        %781 = vmatmul.bf16.gmra.mxu0 %v763
        %v782 = vpop.f32.mrf.mxu0
        %v783 = vadd.f32 %v728, %v782
        %v784 = vpop.f32.mrf.mxu0
        %v785 = vadd.f32 %v728, %v784
        %786 = vdwg.mxu0
        %787 = vst [vmem:[%s242] sm:$0xff] %v778
        %788 = vst [vmem:[%s242 + $0x8] sm:$0xff] %v780
        %789 = vst [vmem:[%s242 + $0x10] sm:$0xff] %v783
        %790 = vst [vmem:[%s242 + $0x18] sm:$0xff] %v785
        %s791 = sand.u32 %s138, 1
        %s792 = scalar_lea.sflag [#allocation4], %s791
        %s793 = sand.u32 %s138, 1
        %s794 = smul.addr %s793, 32
        %s795 = scalar_lea.vmem [#allocation3], %s794
        // Predicated region
        $region37: #{tpu_custom_call.1} parent=35 // pred_check
          %p796 = pneg %p148
        $region38: #{tpu_custom_call.1} parent=35 // pred_check_branch
          %798 = sbr.rel (%p796) target = $region40
        $region39: #{tpu_custom_call.1} parent=35 // pred_region
          %s799 = smul.u32 4, %s23
          %801 = vsyncadd %s792, 0
          %s802 = smul.addr %s22, 8
          %s803 = sadd.s32 %s799, %s802
          %s804 = smul.addr %s803, 8
          %s805 = scalar_lea.hbm %s4, %s804
          %s806 = sshll.u32 %s795, 4
          %s807 = int_to_ptr.vmem [resolvable:$true] %s806
          %s808 = sshll.u32 %s805, 4
          %s809 = int_to_ptr.hbm [resolvable:$true] %s808
          %814 = dma.vmem_to_hbm [thread:$0]  %s807, 512, %s809, %s792, 128, 128, 8
        $region40: #{tpu_custom_call.1} parent=35 // pred_fallthru
          _
      $region36: #{tpu_custom_call.1} parent=5 // pred_fallthru
        _
      %p815 = scmp.le.s32.totalorder 2, %s13
      // Predicated region
      $region41: #{tpu_custom_call.1} parent=5 // pred_check
        %p816 = pneg %p815
      $region42: #{tpu_custom_call.1} parent=5 // pred_check_branch
        %818 = sbr.rel (%p816) target = $region44
      $region43: #{tpu_custom_call.1} parent=5 // pred_region
        %s819 = ssub.s32 %s13, 2
        // Predicated region
        $region45: #{tpu_custom_call.1} parent=43 // pred_check
          %p820 = pneg %p154
        $region46: #{tpu_custom_call.1} parent=43 // pred_check_branch
          %822 = sbr.rel (%p820) target = $region48
        $region47: #{tpu_custom_call.1} parent=43 // pred_region
          %s823 = sand.u32 %s139, 1
          %s824 = scalar_lea.sflag [#allocation4], %s823
          %s825 = sand.u32 %s139, 1
          %s826 = smul.addr %s825, 32
          %s827 = scalar_lea.vmem [#allocation3], %s826
          %829 = dma.done %s824, 512
        $region48: #{tpu_custom_call.1} parent=43 // pred_fallthru
          _
      $region44: #{tpu_custom_call.1} parent=5 // pred_fallthru
        _
    $region6: #{tpu_custom_call.1} parent=1 // loop_footer
      %s17 = sadd.s32 1, %s13
    $region7: #{tpu_custom_call.1} parent=1 // loop_footer_branch
      %12 = sbr.rel target = $region3
    $region8: #{tpu_custom_call.1} parent=1 // loop_exit
      _
    %830 = vsyncpa [#allocation4], 1
    %s831 = scalar_lea.sflag [#allocation4], 1
    %832 = vsyncpa %s831, 1

</llo_original>
